<compile_context>
chip_gen: v7x
topology: tpu7x:2x2x1
jax: 0.10.0
libtpu: 0.0.40
codegen_flags: <defaults>
</compile_context>

<pallas_src>
import math

import jax
import jax.numpy as jnp
from jax import lax
from jax.experimental import pallas as pl
from jax.experimental.pallas import tpu as pltpu


_LANE = 128
_SUBLANE = 8
_TILE_M_MAX = 2048   # rows per grid step (sweepable 2048-4096); ~2 MiB/step
_SPLIT_B = 512       # above this batch size force >=2 grid steps (v7x megacore)

# dot_general dims for A(K-last) contracted with B(K-last): (8,K)x(M,K)->(8,M)
_NT_DIMS = (((1,), (1,)), ((), ()))


def _round_up(n, m):
    return ((n + m - 1) // m) * m


def _softplus(v):
    # Matches torch.nn.Softplus(beta=1, threshold=20):
    #   x          if x > 20
    #   log(1+e^x) otherwise
    # TODO(synk): a VPU polynomial/rational softplus would offload the EUP
    # (exp + log1p) if a bundle dump confirms the EUP slot is the critical unit.
    return jnp.where(v > 20.0, v, jnp.log1p(jnp.exp(v)))


def _alpha_mlp_kernel(x_ref,
                      w1_ref, b1_ref,
                      w2_ref, b2_ref,
                      w3_ref, b3_ref,
                      w4_ref, b4_ref,
                      w5_ref, b5_ref,
                      o_ref,
                      h_ref):
    # Layers 1-4: bf16 MXU matmuls with f32 accumulation + f32 softplus,
    # reusing a single f32 VMEM activation scratch.
    h_ref[...] = _softplus(
        jnp.dot(x_ref[...].astype(jnp.bfloat16), w1_ref[...],
                preferred_element_type=jnp.float32) + b1_ref[...])
    for w_ref, b_ref in ((w2_ref, b2_ref), (w3_ref, b3_ref), (w4_ref, b4_ref)):
        h_ref[...] = _softplus(
            jnp.dot(h_ref[...].astype(jnp.bfloat16), w_ref[...],
                    preferred_element_type=jnp.float32) + b_ref[...])
    # Final Linear(hid, 1), produced lane-dense: w5 is an (8, hid_p) block
    # (row 0 = real weights, rows 1-7 zero) contracted against h (tile_m, hid_p)
    # -> (8, tile_m); row 0 is the output row.  The store is an unmasked,
    # lane-dense (1, tile_m) write instead of a (tile_m, 1) masked column.
    r = lax.dot_general(w5_ref[...], h_ref[...], _NT_DIMS,
                        preferred_element_type=jnp.float32)
    o_ref[...] = (r[0:1, :] + b5_ref[0]).astype(o_ref.dtype)


def _pad_params(params, z1_dim):
    """Zero-pad hidden dim to a lane multiple (128), z1 to a sublane multiple,
    store w1..w4 in bf16 (MXU operands), turn w5 into an (8, hid_p) row block
    and b5 into a (1,) SMEM scalar."""
    hid_d = params["w1"].shape[1]
    hid_p = _round_up(hid_d, _LANE)
    z1_p = _round_up(z1_dim, _SUBLANE)
    p = {}
    p["w1"] = jnp.pad(params["w1"],
                      ((0, z1_p - z1_dim), (0, hid_p - hid_d))).astype(jnp.bfloat16)
    p["b1"] = jnp.pad(params["b1"], ((0, 0), (0, hid_p - hid_d)))
    for i in (2, 3, 4):
        p[f"w{i}"] = jnp.pad(params[f"w{i}"],
                             ((0, hid_p - hid_d), (0, hid_p - hid_d))).astype(jnp.bfloat16)
        p[f"b{i}"] = jnp.pad(params[f"b{i}"], ((0, 0), (0, hid_p - hid_d)))
    # w5: (hid_d, 1) -> (8, hid_p) row block, f32 (tiny).
    p["w5"] = jnp.pad(params["w5"].T, ((0, 7), (0, hid_p - hid_d)))
    p["b5"] = params["b5"].reshape(-1)   # (1,), lives in SMEM
    return p, z1_p, hid_p


@jax.jit
def alpha_forward(x, params):
    """Fused ALPHA MLP forward.

    x: (B, z1_dim) float32
    params: dict of f32 weights (in, out) and biases (1, out)
    returns: (B, 1) float32
    """
    B, z1_dim = x.shape
    pp, z1_p, hid_p = _pad_params(params, z1_dim)

    # Feature-dim (K) zero padding must stay explicit (garbage K lanes times
    # zero weight rows could otherwise give inf*0 = NaN).  No-op when z1_dim
    # is already a sublane multiple.
    x_p = x if z1_p == z1_dim else jnp.pad(x, ((0, 0), (0, z1_p - z1_dim)))

    # Batch tiling: big tiles (per-step overhead ~0.35us), >=2 grid steps for
    # large B (v7x megacore), partial last block masked by Pallas (no row pad,
    # no output slice).
    if B > _SPLIT_B:
        tile_m = min(_TILE_M_MAX, _round_up(pl.cdiv(B, 2), _LANE))
    else:
        tile_m = B
    grid_m = pl.cdiv(B, tile_m)

    resident_args = (pp["w1"], pp["b1"], pp["w2"], pp["b2"], pp["w3"], pp["b3"],
                     pp["w4"], pp["b4"], pp["w5"])

    x_spec = pl.BlockSpec((tile_m, z1_p), lambda i: (i, 0))
    # Weights/biases: full-shape block, constant index -> VMEM-resident.
    resident_specs = [pl.BlockSpec(a.shape, lambda i: (0, 0))
                      for a in resident_args]
    b5_spec = pl.BlockSpec(memory_space=pltpu.MemorySpace.SMEM)
    out_spec = pl.BlockSpec((1, tile_m), lambda i: (0, i))

    out = pl.pallas_call(
        _alpha_mlp_kernel,
        out_shape=jax.ShapeDtypeStruct((1, B), jnp.float32),
        grid_spec=pltpu.PrefetchScalarGridSpec(
            num_scalar_prefetch=0,
            grid=(grid_m,),
            in_specs=[x_spec] + resident_specs + [b5_spec],
            out_specs=out_spec,
            scratch_shapes=[pltpu.VMEM((tile_m, hid_p), jnp.float32)]),
        compiler_params=pltpu.CompilerParams(
            dimension_semantics=("parallel",)),
    )(x_p, *resident_args, pp["b5"])

    # (1, B) and (B, 1) share the same linear layout -> free reshape.
    return out.reshape(B, 1)


def init_alpha_params(key, z1_dim):
    """Deterministic parameter init matching nn.Linear default
    (uniform in +/- 1/sqrt(fan_in)); weights stored as (in, out)."""
    hid_d = min(z1_dim + 50, 100)
    dims = [(z1_dim, hid_d), (hid_d, hid_d), (hid_d, hid_d),
            (hid_d, hid_d), (hid_d, 1)]
    params = {}
    keys = jax.random.split(key, 2 * len(dims))
    for i, (fan_in, fan_out) in enumerate(dims):
        bound = 1.0 / math.sqrt(fan_in)
        w = jax.random.uniform(keys[2 * i], (fan_in, fan_out),
                               minval=-bound, maxval=bound, dtype=jnp.float32)
        b = jax.random.uniform(keys[2 * i + 1], (1, fan_out),
                               minval=-bound, maxval=bound, dtype=jnp.float32)
        params[f"w{i + 1}"] = w
        params[f"b{i + 1}"] = b
    return params, hid_d


def alpha_reference(x, params):
    """Pure-JAX f32 reference of the original module's forward pass."""
    h = x
    for i in range(1, 5):
        h = _softplus(h @ params[f"w{i}"] + params[f"b{i}"])
    return h @ params["w5"] + params["b5"]


def alpha_reference_matched(x, params):
    """Reference matching the kernel's numerics (bf16 dot operands, f32 accum,
    f32 softplus, f32 final layer)."""
    h = x
    for i in range(1, 5):
        w = params[f"w{i}"].astype(jnp.bfloat16)
        h = _softplus(jnp.dot(h.astype(jnp.bfloat16), w,
                              preferred_element_type=jnp.float32)
                      + params[f"b{i}"])
    out = (h * params["w5"][:, 0][None, :]).sum(-1, keepdims=True)
    return out + params["b5"]


if __name__ == "__main__":
    key = jax.random.PRNGKey(0)
    k_param, k_x = jax.random.split(key)

    z1_dim = 32      # -> hid_d = min(32 + 50, 100) = 82 (padded to 128 in kernel)
    params, hid_d = init_alpha_params(k_param, z1_dim)

    # batch=8  : single-step grid (block == full array dims)
    # batch=600: 2-step grid, 128-aligned tiles, masked partial last block
    for batch in (8, 600):
        kx = jax.random.fold_in(k_x, batch)
        x = jax.random.normal(kx, (batch, z1_dim), dtype=jnp.float32)

        out = jax.block_until_ready(alpha_forward(x, params))
        assert out.shape == (batch, 1), out.shape

        ref_matched = alpha_reference_matched(x, params)
        assert jnp.allclose(out, ref_matched, atol=2e-3, rtol=2e-3), \
            f"mismatch vs bf16-matched reference (batch={batch})"

        ref_f32 = alpha_reference(x, params)
        assert jnp.allclose(out, ref_f32, atol=3e-2, rtol=3e-2), \
            f"drift vs f32 reference too large (batch={batch})"

    print("KERNEL_OK")
</pallas_src>

<mosaic_0001>
module attributes {stable_mosaic.version = 11 : i64} {
  func.func @_alpha_mlp_kernel(%arg0: i32, %arg1: memref<8x32xf32, #tpu.memory_space<vmem>>, %arg2: memref<32x128xbf16, #tpu.memory_space<vmem>>, %arg3: memref<1x128xf32, #tpu.memory_space<vmem>>, %arg4: memref<128x128xbf16, #tpu.memory_space<vmem>>, %arg5: memref<1x128xf32, #tpu.memory_space<vmem>>, %arg6: memref<128x128xbf16, #tpu.memory_space<vmem>>, %arg7: memref<1x128xf32, #tpu.memory_space<vmem>>, %arg8: memref<128x128xbf16, #tpu.memory_space<vmem>>, %arg9: memref<1x128xf32, #tpu.memory_space<vmem>>, %arg10: memref<8x128xf32, #tpu.memory_space<vmem>>, %arg11: memref<1xf32, #tpu.memory_space<smem>>, %arg12: memref<1x8xf32, #tpu.memory_space<vmem>>, %arg13: memref<8x128xf32, #tpu.memory_space<vmem>>) attributes {dimension_semantics = [#tpu.dimension_semantics<parallel>], iteration_bounds = array<i64: 1>, scalar_prefetch = 0 : i64, scratch_operands = 1 : i64, tpu.core_type = #tpu.core_type<tc>, window_params = [{transform_indices = @transform_0, window_bounds = array<i64: 8, 32>}, {pipeline_mode = #tpu.pipeline_mode<synchronous>, transform_indices = @transform_1, window_bounds = array<i64: 32, 128>}, {pipeline_mode = #tpu.pipeline_mode<synchronous>, transform_indices = @transform_2, window_bounds = array<i64: 1, 128>}, {pipeline_mode = #tpu.pipeline_mode<synchronous>, transform_indices = @transform_3, window_bounds = array<i64: 128, 128>}, {pipeline_mode = #tpu.pipeline_mode<synchronous>, transform_indices = @transform_4, window_bounds = array<i64: 1, 128>}, {pipeline_mode = #tpu.pipeline_mode<synchronous>, transform_indices = @transform_5, window_bounds = array<i64: 128, 128>}, {pipeline_mode = #tpu.pipeline_mode<synchronous>, transform_indices = @transform_6, window_bounds = array<i64: 1, 128>}, {pipeline_mode = #tpu.pipeline_mode<synchronous>, transform_indices = @transform_7, window_bounds = array<i64: 128, 128>}, {pipeline_mode = #tpu.pipeline_mode<synchronous>, transform_indices = @transform_8, window_bounds = array<i64: 1, 128>}, {pipeline_mode = #tpu.pipeline_mode<synchronous>, transform_indices = @transform_9, window_bounds = array<i64: 8, 128>}, {transform_indices = @transform_10, window_bounds = array<i64: 1>}, {transform_indices = @transform_11, window_bounds = array<i64: 1, 8>}]} {
    %c0 = arith.constant 0 : index
    %c0_0 = arith.constant 0 : index
    %0 = vector.load %arg1[%c0, %c0_0] : memref<8x32xf32, #tpu.memory_space<vmem>>, vector<8x32xf32>
    %1 = arith.truncf %0 : vector<8x32xf32> to vector<8x32xbf16>
    %c0_1 = arith.constant 0 : index
    %c0_2 = arith.constant 0 : index
    %2 = vector.load %arg2[%c0_1, %c0_2] : memref<32x128xbf16, #tpu.memory_space<vmem>>, vector<32x128xbf16>
    %cst = arith.constant dense<0.000000e+00> : vector<8x128xf32>
    %3 = tpu.matmul %1, %2, %cst {dimension_numbers = #tpu.dot_dimension_numbers<[1], [0], [0], [1], [0, 0, 1, 1], [], []>} : vector<8x32xbf16>, vector<32x128xbf16>, vector<8x128xf32> -> vector<8x128xf32>
    %c0_3 = arith.constant 0 : index
    %c0_4 = arith.constant 0 : index
    %4 = vector.load %arg3[%c0_3, %c0_4] : memref<1x128xf32, #tpu.memory_space<vmem>>, vector<1x128xf32>
    %5 = vector.broadcast %4 : vector<1x128xf32> to vector<8x128xf32>
    %6 = arith.addf %3, %5 : vector<8x128xf32>
    %cst_5 = arith.constant 2.000000e+01 : f32
    %7 = vector.broadcast %cst_5 : f32 to vector<8x128xf32>
    %8 = arith.cmpf ogt, %6, %7 : vector<8x128xf32>
    %9 = math.exp %6 : vector<8x128xf32>
    %10 = math.log1p %9 : vector<8x128xf32>
    %11 = arith.select %8, %6, %10 : vector<8x128xi1>, vector<8x128xf32>
    %c0_6 = arith.constant 0 : index
    %c0_7 = arith.constant 0 : index
    %12 = vector.load %arg13[%c0_6, %c0_7] : memref<8x128xf32, #tpu.memory_space<vmem>>, vector<8x128xf32>
    tpu.vector_store %arg13[%c0_6, %c0_7], %11 {strides = array<i32>} : memref<8x128xf32, #tpu.memory_space<vmem>>, vector<8x128xf32>,
    %c0_8 = arith.constant 0 : index
    %c0_9 = arith.constant 0 : index
    %13 = vector.load %arg13[%c0_8, %c0_9] : memref<8x128xf32, #tpu.memory_space<vmem>>, vector<8x128xf32>
    %14 = arith.truncf %13 : vector<8x128xf32> to vector<8x128xbf16>
    %c0_10 = arith.constant 0 : index
    %c0_11 = arith.constant 0 : index
    %15 = vector.load %arg4[%c0_10, %c0_11] : memref<128x128xbf16, #tpu.memory_space<vmem>>, vector<128x128xbf16>
    %cst_12 = arith.constant dense<0.000000e+00> : vector<8x128xf32>
    %16 = tpu.matmul %14, %15, %cst_12 {dimension_numbers = #tpu.dot_dimension_numbers<[1], [0], [0], [1], [0, 0, 1, 1], [], []>} : vector<8x128xbf16>, vector<128x128xbf16>, vector<8x128xf32> -> vector<8x128xf32>
    %c0_13 = arith.constant 0 : index
    %c0_14 = arith.constant 0 : index
    %17 = vector.load %arg5[%c0_13, %c0_14] : memref<1x128xf32, #tpu.memory_space<vmem>>, vector<1x128xf32>
    %18 = vector.broadcast %17 : vector<1x128xf32> to vector<8x128xf32>
    %19 = arith.addf %16, %18 : vector<8x128xf32>
    %cst_15 = arith.constant 2.000000e+01 : f32
    %20 = vector.broadcast %cst_15 : f32 to vector<8x128xf32>
    %21 = arith.cmpf ogt, %19, %20 : vector<8x128xf32>
    %22 = math.exp %19 : vector<8x128xf32>
    %23 = math.log1p %22 : vector<8x128xf32>
    %24 = arith.select %21, %19, %23 : vector<8x128xi1>, vector<8x128xf32>
    %c0_16 = arith.constant 0 : index
    %c0_17 = arith.constant 0 : index
    %25 = vector.load %arg13[%c0_16, %c0_17] : memref<8x128xf32, #tpu.memory_space<vmem>>, vector<8x128xf32>
    tpu.vector_store %arg13[%c0_16, %c0_17], %24 {strides = array<i32>} : memref<8x128xf32, #tpu.memory_space<vmem>>, vector<8x128xf32>,
    %c0_18 = arith.constant 0 : index
    %c0_19 = arith.constant 0 : index
    %26 = vector.load %arg13[%c0_18, %c0_19] : memref<8x128xf32, #tpu.memory_space<vmem>>, vector<8x128xf32>
    %27 = arith.truncf %26 : vector<8x128xf32> to vector<8x128xbf16>
    %c0_20 = arith.constant 0 : index
    %c0_21 = arith.constant 0 : index
    %28 = vector.load %arg6[%c0_20, %c0_21] : memref<128x128xbf16, #tpu.memory_space<vmem>>, vector<128x128xbf16>
    %cst_22 = arith.constant dense<0.000000e+00> : vector<8x128xf32>
    %29 = tpu.matmul %27, %28, %cst_22 {dimension_numbers = #tpu.dot_dimension_numbers<[1], [0], [0], [1], [0, 0, 1, 1], [], []>} : vector<8x128xbf16>, vector<128x128xbf16>, vector<8x128xf32> -> vector<8x128xf32>
    %c0_23 = arith.constant 0 : index
    %c0_24 = arith.constant 0 : index
    %30 = vector.load %arg7[%c0_23, %c0_24] : memref<1x128xf32, #tpu.memory_space<vmem>>, vector<1x128xf32>
    %31 = vector.broadcast %30 : vector<1x128xf32> to vector<8x128xf32>
    %32 = arith.addf %29, %31 : vector<8x128xf32>
    %cst_25 = arith.constant 2.000000e+01 : f32
    %33 = vector.broadcast %cst_25 : f32 to vector<8x128xf32>
    %34 = arith.cmpf ogt, %32, %33 : vector<8x128xf32>
    %35 = math.exp %32 : vector<8x128xf32>
    %36 = math.log1p %35 : vector<8x128xf32>
    %37 = arith.select %34, %32, %36 : vector<8x128xi1>, vector<8x128xf32>
    %c0_26 = arith.constant 0 : index
    %c0_27 = arith.constant 0 : index
    %38 = vector.load %arg13[%c0_26, %c0_27] : memref<8x128xf32, #tpu.memory_space<vmem>>, vector<8x128xf32>
    tpu.vector_store %arg13[%c0_26, %c0_27], %37 {strides = array<i32>} : memref<8x128xf32, #tpu.memory_space<vmem>>, vector<8x128xf32>,
    %c0_28 = arith.constant 0 : index
    %c0_29 = arith.constant 0 : index
    %39 = vector.load %arg13[%c0_28, %c0_29] : memref<8x128xf32, #tpu.memory_space<vmem>>, vector<8x128xf32>
    %40 = arith.truncf %39 : vector<8x128xf32> to vector<8x128xbf16>
    %c0_30 = arith.constant 0 : index
    %c0_31 = arith.constant 0 : index
    %41 = vector.load %arg8[%c0_30, %c0_31] : memref<128x128xbf16, #tpu.memory_space<vmem>>, vector<128x128xbf16>
    %cst_32 = arith.constant dense<0.000000e+00> : vector<8x128xf32>
    %42 = tpu.matmul %40, %41, %cst_32 {dimension_numbers = #tpu.dot_dimension_numbers<[1], [0], [0], [1], [0, 0, 1, 1], [], []>} : vector<8x128xbf16>, vector<128x128xbf16>, vector<8x128xf32> -> vector<8x128xf32>
    %c0_33 = arith.constant 0 : index
    %c0_34 = arith.constant 0 : index
    %43 = vector.load %arg9[%c0_33, %c0_34] : memref<1x128xf32, #tpu.memory_space<vmem>>, vector<1x128xf32>
    %44 = vector.broadcast %43 : vector<1x128xf32> to vector<8x128xf32>
    %45 = arith.addf %42, %44 : vector<8x128xf32>
    %cst_35 = arith.constant 2.000000e+01 : f32
    %46 = vector.broadcast %cst_35 : f32 to vector<8x128xf32>
    %47 = arith.cmpf ogt, %45, %46 : vector<8x128xf32>
    %48 = math.exp %45 : vector<8x128xf32>
    %49 = math.log1p %48 : vector<8x128xf32>
    %50 = arith.select %47, %45, %49 : vector<8x128xi1>, vector<8x128xf32>
    %c0_36 = arith.constant 0 : index
    %c0_37 = arith.constant 0 : index
    %51 = vector.load %arg13[%c0_36, %c0_37] : memref<8x128xf32, #tpu.memory_space<vmem>>, vector<8x128xf32>
    tpu.vector_store %arg13[%c0_36, %c0_37], %50 {strides = array<i32>} : memref<8x128xf32, #tpu.memory_space<vmem>>, vector<8x128xf32>,
    %c0_38 = arith.constant 0 : index
    %c0_39 = arith.constant 0 : index
    %52 = vector.load %arg10[%c0_38, %c0_39] : memref<8x128xf32, #tpu.memory_space<vmem>>, vector<8x128xf32>
    %c0_40 = arith.constant 0 : index
    %c0_41 = arith.constant 0 : index
    %53 = vector.load %arg13[%c0_40, %c0_41] : memref<8x128xf32, #tpu.memory_space<vmem>>, vector<8x128xf32>
    %cst_42 = arith.constant dense<0.000000e+00> : vector<8x8xf32>
    %54 = tpu.matmul %52, %53, %cst_42 {dimension_numbers = #tpu.dot_dimension_numbers<[1], [1], [0], [0], [0, 0, 1, 0], [], []>} : vector<8x128xf32>, vector<8x128xf32>, vector<8x8xf32> -> vector<8x8xf32>
    %55 = vector.extract_strided_slice %54 {offsets = [0, 0], sizes = [1, 8], strides = [1, 1]} : vector<8x8xf32> to vector<1x8xf32>
    %c0_43 = arith.constant 0 : index
    %56 = memref.load %arg11[%c0_43] : memref<1xf32, #tpu.memory_space<smem>>
    %57 = vector.broadcast %56 : f32 to vector<1x8xf32>
    %58 = arith.addf %55, %57 : vector<1x8xf32>
    %c0_44 = arith.constant 0 : index
    %c0_45 = arith.constant 0 : index
    %59 = vector.load %arg12[%c0_44, %c0_45] : memref<1x8xf32, #tpu.memory_space<vmem>>, vector<1x8xf32>
    tpu.vector_store %arg12[%c0_44, %c0_45], %58 {strides = array<i32>} : memref<1x8xf32, #tpu.memory_space<vmem>>, vector<1x8xf32>,
    return
  }
  func.func @transform_0(%arg0: i32) -> (i32, i32) {
    %c0_i32 = arith.constant 0 : i32
    %c0_i32_0 = arith.constant 0 : i32
    return %arg0, %c0_i32 : i32, i32
  }
  func.func @transform_1(%arg0: i32) -> (i32, i32) {
    %c0_i32 = arith.constant 0 : i32
    %c0_i32_0 = arith.constant 0 : i32
    %c0_i32_1 = arith.constant 0 : i32
    return %c0_i32, %c0_i32_0 : i32, i32
  }
  func.func @transform_2(%arg0: i32) -> (i32, i32) {
    %c0_i32 = arith.constant 0 : i32
    %c0_i32_0 = arith.constant 0 : i32
    %c0_i32_1 = arith.constant 0 : i32
    return %c0_i32, %c0_i32_0 : i32, i32
  }
  func.func @transform_3(%arg0: i32) -> (i32, i32) {
    %c0_i32 = arith.constant 0 : i32
    %c0_i32_0 = arith.constant 0 : i32
    %c0_i32_1 = arith.constant 0 : i32
    return %c0_i32, %c0_i32_0 : i32, i32
  }
  func.func @transform_4(%arg0: i32) -> (i32, i32) {
    %c0_i32 = arith.constant 0 : i32
    %c0_i32_0 = arith.constant 0 : i32
    %c0_i32_1 = arith.constant 0 : i32
    return %c0_i32, %c0_i32_0 : i32, i32
  }
  func.func @transform_5(%arg0: i32) -> (i32, i32) {
    %c0_i32 = arith.constant 0 : i32
    %c0_i32_0 = arith.constant 0 : i32
    %c0_i32_1 = arith.constant 0 : i32
    return %c0_i32, %c0_i32_0 : i32, i32
  }
  func.func @transform_6(%arg0: i32) -> (i32, i32) {
    %c0_i32 = arith.constant 0 : i32
    %c0_i32_0 = arith.constant 0 : i32
    %c0_i32_1 = arith.constant 0 : i32
    return %c0_i32, %c0_i32_0 : i32, i32
  }
  func.func @transform_7(%arg0: i32) -> (i32, i32) {
    %c0_i32 = arith.constant 0 : i32
    %c0_i32_0 = arith.constant 0 : i32
    %c0_i32_1 = arith.constant 0 : i32
    return %c0_i32, %c0_i32_0 : i32, i32
  }
  func.func @transform_8(%arg0: i32) -> (i32, i32) {
    %c0_i32 = arith.constant 0 : i32
    %c0_i32_0 = arith.constant 0 : i32
    %c0_i32_1 = arith.constant 0 : i32
    return %c0_i32, %c0_i32_0 : i32, i32
  }
  func.func @transform_9(%arg0: i32) -> (i32, i32) {
    %c0_i32 = arith.constant 0 : i32
    %c0_i32_0 = arith.constant 0 : i32
    %c0_i32_1 = arith.constant 0 : i32
    return %c0_i32, %c0_i32_0 : i32, i32
  }
  func.func @transform_10(%arg0: i32) -> i32 {
    %c0_i32 = arith.constant 0 : i32
    %c0_i32_0 = arith.constant 0 : i32
    return %c0_i32 : i32
  }
  func.func @transform_11(%arg0: i32) -> (i32, i32) {
    %c0_i32 = arith.constant 0 : i32
    %c0_i32_0 = arith.constant 0 : i32
    return %c0_i32, %arg0 : i32, i32
  }
}

</mosaic_0001>

<llo_original>
// kernel: alpha_forward.1
$region0: #{alpha_forward.1}
  #allocation0 [shape = 'u32[]', space=smem, size = 0x4, offset = 0x4, fixed_abs, tag = 'smem constant byte address 0x4 - core index']
  #allocation1 [shape = 'u32[144,128]{1,0:T(1,128)}', space=vmem, size = 0x12000, scoped, tag = 'internal scratch']
  #allocation2 [shape = 'f32[8,128]{1,0:T(8,128)}', space=vmem, size = 0x1000, scoped, tag = 'scratch operand']
  #allocation3 [shape = 'f32[1]{0:T(128)S(6)}', space=smem, size = 0x200, scoped, tag = 'scoped memory for alpha_forward.1']
  %s0 = inlined_call_operand.vmem [shape: f32[8,32], index: 0, kind: input, shape index: {}]
  %s1 = inlined_call_operand.vmem [shape: bf16[32,128], index: 1, kind: input, shape index: {}]
  %s2 = inlined_call_operand.vmem [shape: f32[1,128], index: 2, kind: input, shape index: {}]
  %s3 = inlined_call_operand.vmem [shape: bf16[128,128], index: 3, kind: input, shape index: {}]
  %s4 = inlined_call_operand.vmem [shape: f32[1,128], index: 4, kind: input, shape index: {}]
  %s5 = inlined_call_operand.vmem [shape: bf16[128,128], index: 5, kind: input, shape index: {}]
  %s6 = inlined_call_operand.vmem [shape: f32[1,128], index: 6, kind: input, shape index: {}]
  %s7 = inlined_call_operand.vmem [shape: bf16[128,128], index: 7, kind: input, shape index: {}]
  %s8 = inlined_call_operand.vmem [shape: f32[1,128], index: 8, kind: input, shape index: {}]
  %s9 = inlined_call_operand.vmem [shape: f32[8,128], index: 9, kind: input, shape index: {}]
  %s10 = inlined_call_operand.<no memory space> [shape: f32[1], index: 10, kind: input, shape index: {}]
  %s11 = inlined_call_operand.hbm [shape: f32[1,8], index: 11, kind: output, shape index: {}]
  %s12 = sld [smem:[#allocation0]]
  $region54: #{alpha_forward.1} parent=0
    _
  %s14 = ssub.s32 1, %s12
  %s15 = scalar_select 0, %s14, %s12
  %16 = sst [smem:[#allocation3]] %s10
  $region1: #{alpha_forward.1} parent=0
    #allocation4 [shape = 'u8[512]{0}', space=vmem, size = 0x400, scoped, tag = 'output window, operand 0, single buffered']
    #allocation5 [shape = 's32[1]{0}', space=sflag, size = 0x4, scoped, tag = 'scoped memory for alpha_forward.1']
    %17 = vsyncpa [#allocation5], 0
    // Predicated region
    $region2: #{alpha_forward.1} parent=1 // pred_check
      _
    $region3: #{alpha_forward.1} parent=1 // pred_check_branch
      %19 = sbr.rel (0) target = $region5
    $region4: #{alpha_forward.1} parent=1 // pred_region
      _
    $region5: #{alpha_forward.1} parent=1 // pred_fallthru
      _
    // Predicated region
    $region6: #{alpha_forward.1} parent=1 // pred_check
      _
    $region7: #{alpha_forward.1} parent=1 // pred_check_branch
      %21 = sbr.rel (0) target = $region9
    $region8: #{alpha_forward.1} parent=1 // pred_region
      _
    $region9: #{alpha_forward.1} parent=1 // pred_fallthru
      _
    // Predicated region
    $region10: #{alpha_forward.1} parent=1 // pred_check
      _
    $region11: #{alpha_forward.1} parent=1 // pred_check_branch
      %23 = sbr.rel (0) target = $region13
    $region12: #{alpha_forward.1} parent=1 // pred_region
      _
    $region13: #{alpha_forward.1} parent=1 // pred_fallthru
      _
    // Predicated region
    $region14: #{alpha_forward.1} parent=1 // pred_check
      _
    $region15: #{alpha_forward.1} parent=1 // pred_check_branch
      %25 = sbr.rel (0) target = $region17
    $region16: #{alpha_forward.1} parent=1 // pred_region
      _
    $region17: #{alpha_forward.1} parent=1 // pred_fallthru
      _
    // Predicated region
    $region18: #{alpha_forward.1} parent=1 // pred_check
      _
    $region19: #{alpha_forward.1} parent=1 // pred_check_branch
      %27 = sbr.rel (0) target = $region21
    $region20: #{alpha_forward.1} parent=1 // pred_region
      _
    $region21: #{alpha_forward.1} parent=1 // pred_fallthru
      _
    // Predicated region
    $region22: #{alpha_forward.1} parent=1 // pred_check
      _
    $region23: #{alpha_forward.1} parent=1 // pred_check_branch
      %29 = sbr.rel (0) target = $region25
    $region24: #{alpha_forward.1} parent=1 // pred_region
      _
    $region25: #{alpha_forward.1} parent=1 // pred_fallthru
      _
    // Predicated region
    $region26: #{alpha_forward.1} parent=1 // pred_check
      _
    $region27: #{alpha_forward.1} parent=1 // pred_check_branch
      %31 = sbr.rel (0) target = $region29
    $region28: #{alpha_forward.1} parent=1 // pred_region
      _
    $region29: #{alpha_forward.1} parent=1 // pred_fallthru
      _
    // Predicated region
    $region30: #{alpha_forward.1} parent=1 // pred_check
      _
    $region31: #{alpha_forward.1} parent=1 // pred_check_branch
      %33 = sbr.rel (0) target = $region33
    $region32: #{alpha_forward.1} parent=1 // pred_region
      _
    $region33: #{alpha_forward.1} parent=1 // pred_fallthru
      _
    // Predicated region
    $region34: #{alpha_forward.1} parent=1 // pred_check
      _
    $region35: #{alpha_forward.1} parent=1 // pred_check_branch
      %35 = sbr.rel (0) target = $region37
    $region36: #{alpha_forward.1} parent=1 // pred_region
      _
    $region37: #{alpha_forward.1} parent=1 // pred_fallthru
      _
    // Predicated region
    $region38: #{alpha_forward.1} parent=1 // pred_check
      _
    $region39: #{alpha_forward.1} parent=1 // pred_check_branch
      %37 = sbr.rel (0) target = $region41
    $region40: #{alpha_forward.1} parent=1 // pred_region
      _
    $region41: #{alpha_forward.1} parent=1 // pred_fallthru
      _
    // Predicated region
    $region42: #{alpha_forward.1} parent=1 // pred_check
      _
    $region43: #{alpha_forward.1} parent=1 // pred_check_branch
      %39 = sbr.rel (0) target = $region45
    $region44: #{alpha_forward.1} parent=1 // pred_region
      _
    $region45: #{alpha_forward.1} parent=1 // pred_fallthru
      _
    %v41 = vld [vmem:[%s0] sm:$0xff]
    %v42 = vpack.c.bf16 %v41, %v41
    %v43 = vld [vmem:[%s1] sm:$0xf]
    %v44 = vld [vmem:[%s1 + $0x4] sm:$0xf]
    %v45 = vld [vmem:[%s1 + $0x8] sm:$0xf]
    %v46 = vld [vmem:[%s1 + $0xc] sm:$0xf]
    %v47 = vld [vmem:[%s2] sm:$0x1]
    %v49 = vlaneseq
    %v50 = vshrl.u32 %v49, 7
    %v51 = vsub.s32 0, %v50
    %v52 = vrot.slane %v47, %v51
    %v58 = vunpack.c.l.b16 %v43
    %v59 = vunpack.c.l.b16 %v44
    %v60 = vunpack.c.l.b16 %v45
    %v61 = vunpack.c.l.b16 %v46
    %v62 = vpack.c.b16 %v59, %v58
    %v63 = vpack.c.b16 %v61, %v60
    %vm66 = vcmask 261120
    %v68 = vsel %vm66, %v42, 0
    %70 = vmatprep.subr.bf16.mxu0 0
    %71 = vmatpush1.bf16.msra.mxu0 %v62
    %72 = vmatprep.subr.bf16.mxu0 0
    %73 = vmatpush1.bf16.msra.mxu0 %v63
    %74 = vmatprep.subr.bf16.mxu0 0
    %75 = vmatpush1.bf16.msra.mxu0 0
    %76 = vmatprep.subr.bf16.mxu0 0
    %77 = vmatpush1.bf16.msra.mxu0 0
    %78 = vmatprep.subr.bf16.mxu0 0
    %79 = vmatpush1.bf16.msra.mxu0 0
    %80 = vmatprep.subr.bf16.mxu0 0
    %81 = vmatpush1.bf16.msra.mxu0 0
    %82 = vmatprep.subr.bf16.mxu0 0
    %83 = vmatpush1.bf16.msra.mxu0 0
    %84 = vmatprep.subr.bf16.mxu0 0
    %85 = vmatpush1.bf16.msra.mxu0 0
    %86 = vmatprep.subr.bf16.mxu0 0
    %87 = vmatpush1.bf16.msra.mxu0 0
    %88 = vmatprep.subr.bf16.mxu0 0
    %89 = vmatpush1.bf16.msra.mxu0 0
    %90 = vmatprep.subr.bf16.mxu0 0
    %91 = vmatpush1.bf16.msra.mxu0 0
    %92 = vmatprep.subr.bf16.mxu0 0
    %93 = vmatpush1.bf16.msra.mxu0 0
    %94 = vmatprep.subr.bf16.mxu0 0
    %95 = vmatpush1.bf16.msra.mxu0 0
    %96 = vmatprep.subr.bf16.mxu0 0
    %97 = vmatpush1.bf16.msra.mxu0 0
    %98 = vmatprep.subr.bf16.mxu0 0
    %99 = vmatpush1.bf16.msra.mxu0 0
    %100 = vmatprep.subr.bf16.mxu0 0
    %101 = vmatpush1.bf16.msra.mxu0 0
    %102 = vmatprep.mubr.bf16.mxu0 0
    %103 = vmatmul.mubr.bf16.gmra.mrb[0].mxu0 %v68
    %v104 = vpop.f32.mrb[0].mxu0
    %v105 = vadd.f32 %v52, %v104
    %v106 = vpop.f32.mrb[0].mxu0
    %v107 = vpop.f32.mrb[0].mxu0
    %v108 = vpop.f32.mrb[0].mxu0
    %109 = vdwg.mxu0
    %vm110 = vcmp.gt.f32.partialorder %v105, 20.0
    %v111 = vmul.f32 %v105, 1.442695
    %v112 = vpow.pop %v111
    %v113 = vadd.f32 %v112, 1.0
    %v114 = vlog2.pop %v113
    %v115 = vmul.f32 %v114, 0.6931472
    %v116 = vmul.f32 -0.5, %v112
    %v117 = vadd.f32 %v116, 1.0
    %v118 = vmul.f32 %v117, %v112
    %v119 = vand.u32 2147483647, %v112
    %vm120 = vcmp.lt.f32.partialorder %v119, 0.0004427343
    %v121 = vsel %vm120, %v118, %v115
    %v122 = vsel %vm110, %v105, %v121
    %123 = vst [vmem:[#allocation2] sm:$0xff] %v122
    %v124 = vld [vmem:[#allocation2] sm:$0xff]
    %v125 = vpack.c.bf16 %v124, %v124
    %v126 = vld [vmem:[%s3] sm:$0xf]
    %v127 = vld [vmem:[%s3 + $0x4] sm:$0xf]
    %v128 = vld [vmem:[%s3 + $0x8] sm:$0xf]
    %v129 = vld [vmem:[%s3 + $0xc] sm:$0xf]
    %v130 = vld [vmem:[%s3 + $0x10] sm:$0xf]
    %v131 = vld [vmem:[%s3 + $0x14] sm:$0xf]
    %v132 = vld [vmem:[%s3 + $0x18] sm:$0xf]
    %v133 = vld [vmem:[%s3 + $0x1c] sm:$0xf]
    %v134 = vld [vmem:[%s3 + $0x20] sm:$0xf]
    %v135 = vld [vmem:[%s3 + $0x24] sm:$0xf]
    %v136 = vld [vmem:[%s3 + $0x28] sm:$0xf]
    %v137 = vld [vmem:[%s3 + $0x2c] sm:$0xf]
    %v138 = vld [vmem:[%s3 + $0x30] sm:$0xf]
    %v139 = vld [vmem:[%s3 + $0x34] sm:$0xf]
    %v140 = vld [vmem:[%s3 + $0x38] sm:$0xf]
    %v141 = vld [vmem:[%s3 + $0x3c] sm:$0xf]
    %v142 = vld [vmem:[%s4] sm:$0x1]
    %v144 = vlaneseq
    %v145 = vshrl.u32 %v144, 7
    %v146 = vsub.s32 0, %v145
    %v147 = vrot.slane %v142, %v146
    %v165 = vunpack.c.l.b16 %v126
    %v166 = vunpack.c.l.b16 %v127
    %v167 = vunpack.c.l.b16 %v128
    %v168 = vunpack.c.l.b16 %v129
    %v169 = vunpack.c.l.b16 %v130
    %v170 = vunpack.c.l.b16 %v131
    %v171 = vunpack.c.l.b16 %v132
    %v172 = vunpack.c.l.b16 %v133
    %v173 = vunpack.c.l.b16 %v134
    %v174 = vunpack.c.l.b16 %v135
    %v175 = vunpack.c.l.b16 %v136
    %v176 = vunpack.c.l.b16 %v137
    %v177 = vunpack.c.l.b16 %v138
    %v178 = vunpack.c.l.b16 %v139
    %v179 = vunpack.c.l.b16 %v140
    %v180 = vunpack.c.l.b16 %v141
    %v181 = vpack.c.b16 %v166, %v165
    %v182 = vpack.c.b16 %v168, %v167
    %v183 = vpack.c.b16 %v170, %v169
    %v184 = vpack.c.b16 %v172, %v171
    %v185 = vpack.c.b16 %v174, %v173
    %v186 = vpack.c.b16 %v176, %v175
    %v187 = vpack.c.b16 %v178, %v177
    %v188 = vpack.c.b16 %v180, %v179
    %197 = vmatprep.subr.bf16.mxu0 0
    %198 = vmatpush1.bf16.msra.mxu0 %v181
    %199 = vmatprep.subr.bf16.mxu0 0
    %200 = vmatpush1.bf16.msra.mxu0 %v182
    %201 = vmatprep.subr.bf16.mxu0 0
    %202 = vmatpush1.bf16.msra.mxu0 %v183
    %203 = vmatprep.subr.bf16.mxu0 0
    %204 = vmatpush1.bf16.msra.mxu0 %v184
    %205 = vmatprep.subr.bf16.mxu0 0
    %206 = vmatpush1.bf16.msra.mxu0 %v185
    %207 = vmatprep.subr.bf16.mxu0 0
    %208 = vmatpush1.bf16.msra.mxu0 %v186
    %209 = vmatprep.subr.bf16.mxu0 0
    %210 = vmatpush1.bf16.msra.mxu0 %v187
    %211 = vmatprep.subr.bf16.mxu0 0
    %212 = vmatpush1.bf16.msra.mxu0 %v188
    %213 = vmatprep.subr.bf16.mxu0 0
    %214 = vmatpush1.bf16.msra.mxu0 0
    %215 = vmatprep.subr.bf16.mxu0 0
    %216 = vmatpush1.bf16.msra.mxu0 0
    %217 = vmatprep.subr.bf16.mxu0 0
    %218 = vmatpush1.bf16.msra.mxu0 0
    %219 = vmatprep.subr.bf16.mxu0 0
    %220 = vmatpush1.bf16.msra.mxu0 0
    %221 = vmatprep.subr.bf16.mxu0 0
    %222 = vmatpush1.bf16.msra.mxu0 0
    %223 = vmatprep.subr.bf16.mxu0 0
    %224 = vmatpush1.bf16.msra.mxu0 0
    %225 = vmatprep.subr.bf16.mxu0 0
    %226 = vmatpush1.bf16.msra.mxu0 0
    %227 = vmatprep.subr.bf16.mxu0 0
    %228 = vmatpush1.bf16.msra.mxu0 0
    %229 = vmatprep.mubr.bf16.mxu0 0
    %230 = vmatmul.mubr.bf16.gmra.mrb[0].mxu0 %v125
    %v231 = vpop.f32.mrb[0].mxu0
    %v232 = vadd.f32 %v147, %v231
    %v233 = vpop.f32.mrb[0].mxu0
    %v234 = vpop.f32.mrb[0].mxu0
    %v235 = vpop.f32.mrb[0].mxu0
    %236 = vdwg.mxu0
    %vm237 = vcmp.gt.f32.partialorder %v232, 20.0
    %v238 = vmul.f32 %v232, 1.442695
    %v239 = vpow.pop %v238
    %v240 = vadd.f32 %v239, 1.0
    %v241 = vlog2.pop %v240
    %v242 = vmul.f32 %v241, 0.6931472
    %v243 = vmul.f32 -0.5, %v239
    %v244 = vadd.f32 %v243, 1.0
    %v245 = vmul.f32 %v244, %v239
    %v246 = vand.u32 2147483647, %v239
    %vm247 = vcmp.lt.f32.partialorder %v246, 0.0004427343
    %v248 = vsel %vm247, %v245, %v242
    %v249 = vsel %vm237, %v232, %v248
    %250 = vst [vmem:[#allocation2] sm:$0xff] %v249
    %v251 = vld [vmem:[#allocation2] sm:$0xff]
    %v252 = vpack.c.bf16 %v251, %v251
    %v253 = vld [vmem:[%s5] sm:$0xf]
    %v254 = vld [vmem:[%s5 + $0x4] sm:$0xf]
    %v255 = vld [vmem:[%s5 + $0x8] sm:$0xf]
    %v256 = vld [vmem:[%s5 + $0xc] sm:$0xf]
    %v257 = vld [vmem:[%s5 + $0x10] sm:$0xf]
    %v258 = vld [vmem:[%s5 + $0x14] sm:$0xf]
    %v259 = vld [vmem:[%s5 + $0x18] sm:$0xf]
    %v260 = vld [vmem:[%s5 + $0x1c] sm:$0xf]
    %v261 = vld [vmem:[%s5 + $0x20] sm:$0xf]
    %v262 = vld [vmem:[%s5 + $0x24] sm:$0xf]
    %v263 = vld [vmem:[%s5 + $0x28] sm:$0xf]
    %v264 = vld [vmem:[%s5 + $0x2c] sm:$0xf]
    %v265 = vld [vmem:[%s5 + $0x30] sm:$0xf]
    %v266 = vld [vmem:[%s5 + $0x34] sm:$0xf]
    %v267 = vld [vmem:[%s5 + $0x38] sm:$0xf]
    %v268 = vld [vmem:[%s5 + $0x3c] sm:$0xf]
    %v269 = vld [vmem:[%s6] sm:$0x1]
    %v271 = vlaneseq
    %v272 = vshrl.u32 %v271, 7
    %v273 = vsub.s32 0, %v272
    %v274 = vrot.slane %v269, %v273
    %v292 = vunpack.c.l.b16 %v253
    %v293 = vunpack.c.l.b16 %v254
    %v294 = vunpack.c.l.b16 %v255
    %v295 = vunpack.c.l.b16 %v256
    %v296 = vunpack.c.l.b16 %v257
    %v297 = vunpack.c.l.b16 %v258
    %v298 = vunpack.c.l.b16 %v259
    %v299 = vunpack.c.l.b16 %v260
    %v300 = vunpack.c.l.b16 %v261
    %v301 = vunpack.c.l.b16 %v262
    %v302 = vunpack.c.l.b16 %v263
    %v303 = vunpack.c.l.b16 %v264
    %v304 = vunpack.c.l.b16 %v265
    %v305 = vunpack.c.l.b16 %v266
    %v306 = vunpack.c.l.b16 %v267
    %v307 = vunpack.c.l.b16 %v268
    %v308 = vpack.c.b16 %v293, %v292
    %v309 = vpack.c.b16 %v295, %v294
    %v310 = vpack.c.b16 %v297, %v296
    %v311 = vpack.c.b16 %v299, %v298
    %v312 = vpack.c.b16 %v301, %v300
    %v313 = vpack.c.b16 %v303, %v302
    %v314 = vpack.c.b16 %v305, %v304
    %v315 = vpack.c.b16 %v307, %v306
    %324 = vmatprep.subr.bf16.mxu0 0
    %325 = vmatpush1.bf16.msra.mxu0 %v308
    %326 = vmatprep.subr.bf16.mxu0 0
    %327 = vmatpush1.bf16.msra.mxu0 %v309
    %328 = vmatprep.subr.bf16.mxu0 0
    %329 = vmatpush1.bf16.msra.mxu0 %v310
    %330 = vmatprep.subr.bf16.mxu0 0
    %331 = vmatpush1.bf16.msra.mxu0 %v311
    %332 = vmatprep.subr.bf16.mxu0 0
    %333 = vmatpush1.bf16.msra.mxu0 %v312
    %334 = vmatprep.subr.bf16.mxu0 0
    %335 = vmatpush1.bf16.msra.mxu0 %v313
    %336 = vmatprep.subr.bf16.mxu0 0
    %337 = vmatpush1.bf16.msra.mxu0 %v314
    %338 = vmatprep.subr.bf16.mxu0 0
    %339 = vmatpush1.bf16.msra.mxu0 %v315
    %340 = vmatprep.subr.bf16.mxu0 0
    %341 = vmatpush1.bf16.msra.mxu0 0
    %342 = vmatprep.subr.bf16.mxu0 0
    %343 = vmatpush1.bf16.msra.mxu0 0
    %344 = vmatprep.subr.bf16.mxu0 0
    %345 = vmatpush1.bf16.msra.mxu0 0
    %346 = vmatprep.subr.bf16.mxu0 0
    %347 = vmatpush1.bf16.msra.mxu0 0
    %348 = vmatprep.subr.bf16.mxu0 0
    %349 = vmatpush1.bf16.msra.mxu0 0
    %350 = vmatprep.subr.bf16.mxu0 0
    %351 = vmatpush1.bf16.msra.mxu0 0
    %352 = vmatprep.subr.bf16.mxu0 0
    %353 = vmatpush1.bf16.msra.mxu0 0
    %354 = vmatprep.subr.bf16.mxu0 0
    %355 = vmatpush1.bf16.msra.mxu0 0
    %356 = vmatprep.mubr.bf16.mxu0 0
    %357 = vmatmul.mubr.bf16.gmra.mrb[0].mxu0 %v252
    %v358 = vpop.f32.mrb[0].mxu0
    %v359 = vadd.f32 %v274, %v358
    %v360 = vpop.f32.mrb[0].mxu0
    %v361 = vpop.f32.mrb[0].mxu0
    %v362 = vpop.f32.mrb[0].mxu0
    %363 = vdwg.mxu0
    %vm364 = vcmp.gt.f32.partialorder %v359, 20.0
    %v365 = vmul.f32 %v359, 1.442695
    %v366 = vpow.pop %v365
    %v367 = vadd.f32 %v366, 1.0
    %v368 = vlog2.pop %v367
    %v369 = vmul.f32 %v368, 0.6931472
    %v370 = vmul.f32 -0.5, %v366
    %v371 = vadd.f32 %v370, 1.0
    %v372 = vmul.f32 %v371, %v366
    %v373 = vand.u32 2147483647, %v366
    %vm374 = vcmp.lt.f32.partialorder %v373, 0.0004427343
    %v375 = vsel %vm374, %v372, %v369
    %v376 = vsel %vm364, %v359, %v375
    %377 = vst [vmem:[#allocation2] sm:$0xff] %v376
    %v378 = vld [vmem:[#allocation2] sm:$0xff]
    %v379 = vpack.c.bf16 %v378, %v378
    %v380 = vld [vmem:[%s7] sm:$0xf]
    %v381 = vld [vmem:[%s7 + $0x4] sm:$0xf]
    %v382 = vld [vmem:[%s7 + $0x8] sm:$0xf]
    %v383 = vld [vmem:[%s7 + $0xc] sm:$0xf]
    %v384 = vld [vmem:[%s7 + $0x10] sm:$0xf]
    %v385 = vld [vmem:[%s7 + $0x14] sm:$0xf]
    %v386 = vld [vmem:[%s7 + $0x18] sm:$0xf]
    %v387 = vld [vmem:[%s7 + $0x1c] sm:$0xf]
    %v388 = vld [vmem:[%s7 + $0x20] sm:$0xf]
    %v389 = vld [vmem:[%s7 + $0x24] sm:$0xf]
    %v390 = vld [vmem:[%s7 + $0x28] sm:$0xf]
    %v391 = vld [vmem:[%s7 + $0x2c] sm:$0xf]
    %v392 = vld [vmem:[%s7 + $0x30] sm:$0xf]
    %v393 = vld [vmem:[%s7 + $0x34] sm:$0xf]
    %v394 = vld [vmem:[%s7 + $0x38] sm:$0xf]
    %v395 = vld [vmem:[%s7 + $0x3c] sm:$0xf]
    %v396 = vld [vmem:[%s8] sm:$0x1]
    %v398 = vlaneseq
    %v399 = vshrl.u32 %v398, 7
    %v400 = vsub.s32 0, %v399
    %v401 = vrot.slane %v396, %v400
    %v419 = vunpack.c.l.b16 %v380
    %v420 = vunpack.c.l.b16 %v381
    %v421 = vunpack.c.l.b16 %v382
    %v422 = vunpack.c.l.b16 %v383
    %v423 = vunpack.c.l.b16 %v384
    %v424 = vunpack.c.l.b16 %v385
    %v425 = vunpack.c.l.b16 %v386
    %v426 = vunpack.c.l.b16 %v387
    %v427 = vunpack.c.l.b16 %v388
    %v428 = vunpack.c.l.b16 %v389
    %v429 = vunpack.c.l.b16 %v390
    %v430 = vunpack.c.l.b16 %v391
    %v431 = vunpack.c.l.b16 %v392
    %v432 = vunpack.c.l.b16 %v393
    %v433 = vunpack.c.l.b16 %v394
    %v434 = vunpack.c.l.b16 %v395
    %v435 = vpack.c.b16 %v420, %v419
    %v436 = vpack.c.b16 %v422, %v421
    %v437 = vpack.c.b16 %v424, %v423
    %v438 = vpack.c.b16 %v426, %v425
    %v439 = vpack.c.b16 %v428, %v427
    %v440 = vpack.c.b16 %v430, %v429
    %v441 = vpack.c.b16 %v432, %v431
    %v442 = vpack.c.b16 %v434, %v433
    %451 = vmatprep.subr.bf16.mxu0 0
    %452 = vmatpush1.bf16.msra.mxu0 %v435
    %453 = vmatprep.subr.bf16.mxu0 0
    %454 = vmatpush1.bf16.msra.mxu0 %v436
    %455 = vmatprep.subr.bf16.mxu0 0
    %456 = vmatpush1.bf16.msra.mxu0 %v437
    %457 = vmatprep.subr.bf16.mxu0 0
    %458 = vmatpush1.bf16.msra.mxu0 %v438
    %459 = vmatprep.subr.bf16.mxu0 0
    %460 = vmatpush1.bf16.msra.mxu0 %v439
    %461 = vmatprep.subr.bf16.mxu0 0
    %462 = vmatpush1.bf16.msra.mxu0 %v440
    %463 = vmatprep.subr.bf16.mxu0 0
    %464 = vmatpush1.bf16.msra.mxu0 %v441
    %465 = vmatprep.subr.bf16.mxu0 0
    %466 = vmatpush1.bf16.msra.mxu0 %v442
    %467 = vmatprep.subr.bf16.mxu0 0
    %468 = vmatpush1.bf16.msra.mxu0 0
    %469 = vmatprep.subr.bf16.mxu0 0
    %470 = vmatpush1.bf16.msra.mxu0 0
    %471 = vmatprep.subr.bf16.mxu0 0
    %472 = vmatpush1.bf16.msra.mxu0 0
    %473 = vmatprep.subr.bf16.mxu0 0
    %474 = vmatpush1.bf16.msra.mxu0 0
    %475 = vmatprep.subr.bf16.mxu0 0
    %476 = vmatpush1.bf16.msra.mxu0 0
    %477 = vmatprep.subr.bf16.mxu0 0
    %478 = vmatpush1.bf16.msra.mxu0 0
    %479 = vmatprep.subr.bf16.mxu0 0
    %480 = vmatpush1.bf16.msra.mxu0 0
    %481 = vmatprep.subr.bf16.mxu0 0
    %482 = vmatpush1.bf16.msra.mxu0 0
    %483 = vmatprep.mubr.bf16.mxu0 0
    %484 = vmatmul.mubr.bf16.gmra.mrb[0].mxu0 %v379
    %v485 = vpop.f32.mrb[0].mxu0
    %v486 = vadd.f32 %v401, %v485
    %v487 = vpop.f32.mrb[0].mxu0
    %v488 = vpop.f32.mrb[0].mxu0
    %v489 = vpop.f32.mrb[0].mxu0
    %490 = vdwg.mxu0
    %vm491 = vcmp.gt.f32.partialorder %v486, 20.0
    %v492 = vmul.f32 %v486, 1.442695
    %v493 = vpow.pop %v492
    %v494 = vadd.f32 %v493, 1.0
    %v495 = vlog2.pop %v494
    %v496 = vmul.f32 %v495, 0.6931472
    %v497 = vmul.f32 -0.5, %v493
    %v498 = vadd.f32 %v497, 1.0
    %v499 = vmul.f32 %v498, %v493
    %v500 = vand.u32 2147483647, %v493
    %vm501 = vcmp.lt.f32.partialorder %v500, 0.0004427343
    %v502 = vsel %vm501, %v499, %v496
    %v503 = vsel %vm491, %v486, %v502
    %504 = vst [vmem:[#allocation2] sm:$0xff] %v503
    %v505 = vld [vmem:[%s9] sm:$0xff]
    %v506 = vld [vmem:[#allocation2] sm:$0xff]
    %507 = vmatprep.subr.mxu0 0.0
    %508 = vmatpush1.xpose.msra.mxu0 %v506
    %509 = vmatprep.subr.mxu0 0.0
    %510 = vmatpush1.xpose.msra.mxu0 0.0
    %511 = vmatprep.subr.mxu0 0.0
    %512 = vmatpush1.xpose.msra.mxu0 0.0
    %513 = vmatprep.subr.mxu0 0.0
    %514 = vmatpush1.xpose.msra.mxu0 0.0
    %515 = vmatprep.subr.mxu0 0.0
    %516 = vmatpush1.xpose.msra.mxu0 0.0
    %517 = vmatprep.subr.mxu0 0.0
    %518 = vmatpush1.xpose.msra.mxu0 0.0
    %519 = vmatprep.subr.mxu0 0.0
    %520 = vmatpush1.xpose.msra.mxu0 0.0
    %521 = vmatprep.subr.mxu0 0.0
    %522 = vmatpush1.xpose.msra.mxu0 0.0
    %523 = vmatprep.subr.mxu0 0.0
    %524 = vmatpush1.xpose.msra.mxu0 0.0
    %525 = vmatprep.subr.mxu0 0.0
    %526 = vmatpush1.xpose.msra.mxu0 0.0
    %527 = vmatprep.subr.mxu0 0.0
    %528 = vmatpush1.xpose.msra.mxu0 0.0
    %529 = vmatprep.subr.mxu0 0.0
    %530 = vmatpush1.xpose.msra.mxu0 0.0
    %531 = vmatprep.subr.mxu0 0.0
    %532 = vmatpush1.xpose.msra.mxu0 0.0
    %533 = vmatprep.subr.mxu0 0.0
    %534 = vmatpush1.xpose.msra.mxu0 0.0
    %535 = vmatprep.subr.mxu0 0.0
    %536 = vmatpush1.xpose.msra.mxu0 0.0
    %537 = vmatprep.subr.mxu0 0.0
    %538 = vmatpush1.xpose.msra.mxu0 0.0
    %539 = vmatprep.subr.mxu0 0.0
    %540 = vmatpush1.xpose.msra.mxu0 0.0
    %541 = vmatprep.subr.mxu0 0.0
    %542 = vmatpush1.xpose.msra.mxu0 0.0
    %543 = vmatprep.subr.mxu0 0.0
    %544 = vmatpush1.xpose.msra.mxu0 0.0
    %545 = vmatprep.subr.mxu0 0.0
    %546 = vmatpush1.xpose.msra.mxu0 0.0
    %547 = vmatprep.subr.mxu0 0.0
    %548 = vmatpush1.xpose.msra.mxu0 0.0
    %549 = vmatprep.subr.mxu0 0.0
    %550 = vmatpush1.xpose.msra.mxu0 0.0
    %551 = vmatprep.subr.mxu0 0.0
    %552 = vmatpush1.xpose.msra.mxu0 0.0
    %553 = vmatprep.subr.mxu0 0.0
    %554 = vmatpush1.xpose.msra.mxu0 0.0
    %555 = vmatprep.subr.mxu0 0.0
    %556 = vmatpush1.xpose.msra.mxu0 0.0
    %557 = vmatprep.subr.mxu0 0.0
    %558 = vmatpush1.xpose.msra.mxu0 0.0
    %559 = vmatprep.subr.mxu0 0.0
    %560 = vmatpush1.xpose.msra.mxu0 0.0
    %561 = vmatprep.subr.mxu0 0.0
    %562 = vmatpush1.xpose.msra.mxu0 0.0
    %563 = vmatprep.subr.mxu0 0.0
    %564 = vmatpush1.xpose.msra.mxu0 0.0
    %565 = vmatprep.subr.mxu0 0.0
    %566 = vmatpush1.xpose.msra.mxu0 0.0
    %567 = vmatprep.subr.mxu0 0.0
    %568 = vmatpush1.xpose.msra.mxu0 0.0
    %569 = vmatprep.subr.mxu0 0.0
    %570 = vmatpush1.xpose.msra.mxu0 0.0
    %571 = vmatprep.mubr.f32.mxu0 0.0
    %572 = vmatmul.mubr.f32.gmra.mrb[0].mxu0 %v505
    %v573 = vpop.f32.mrb[0].mxu0
    %v574 = vadd.f32 0.0, %v573
    %v575 = vpop.f32.mrb[0].mxu0
    %576 = vdwg.mxu0
    %s577 = sld [smem:[#allocation3]]
    %v578 = vstv %s577
    %v579 = vadd.f32 %v574, %v578
    %vm580 = vcmask 57344
    %581 = vst.msk [vmem:[#allocation4] sm:$0x1] %vm580, %v579
    // Predicated region
    $region46: #{alpha_forward.1} parent=1 // pred_check
      _
    $region47: #{alpha_forward.1} parent=1 // pred_check_branch
      %583 = sbr.rel (0) target = $region49
    $region48: #{alpha_forward.1} parent=1 // pred_region
      %s585 = ssub.s32 16, 16
      %586 = vsyncadd [#allocation5], %s585
      %s588 = sshll.u32 [#allocation4], 4
      %s589 = int_to_ptr.vmem [resolvable:$true] %s588
      %591 = dma.vmem_to_hbm [thread:$0]  %s589, 16, %s11, [#allocation5]
    $region49: #{alpha_forward.1} parent=1 // pred_fallthru
      _
    // Predicated region
    $region50: #{alpha_forward.1} parent=1 // pred_check
      _
    $region51: #{alpha_forward.1} parent=1 // pred_check_branch
      %593 = sbr.rel (0) target = $region53
    $region52: #{alpha_forward.1} parent=1 // pred_region
      %594 = dma.done [#allocation5], 16
    $region53: #{alpha_forward.1} parent=1 // pred_fallthru
      _
    %595 = vsyncpa [#allocation5], 1

</llo_original>
